<compile_context>
chip_gen: v7x
topology: tpu7x:2x2x1
jax: 0.10.0
libtpu: 0.0.40
codegen_flags: <defaults>
</compile_context>

<pallas_src>
import jax
import jax.numpy as jnp
from jax.experimental import pallas as pl
from jax.experimental.pallas import tpu as pltpu


# Scoped-VMEM limit: raises the 16/32 MiB defaults on v5e/v6e while staying
# safely under v7x's 64 MiB physical VMEM.  Actual usage here is tiny.
_VMEM_LIMIT_BYTES = 48 * 1024 * 1024

# Cap on the spatial (lane) tile.  f32 x-tile is C * t_hw * 4 bytes, so even at
# hourglass-sized channel counts (C ~ 256) a 2048-lane tile double-buffered
# plus the output tile stays well inside every generation's VMEM budget.
_MAX_T_HW = 2048


def _choose_spatial_tile(n_batch, hw):
    """Pick a lane-dense spatial tile (multiple of 128 or the full H*W)."""
    t_hw = hw if hw <= _MAX_T_HW else _MAX_T_HW
    n_t = pl.cdiv(hw, t_hw)
    # Keep >=2 grid steps when possible so v7x's two TensorCores both get work.
    if n_batch * n_t < 2 and hw > 128:
        t_hw = max(128, ((hw // 2) + 127) // 128 * 128)
        n_t = pl.cdiv(hw, t_hw)
    return t_hw, n_t


def bn_relu_conv(x_nchw, gamma, beta, conv_w, conv_b, *, eps=1e-5):
    N, C, H, W = x_nchw.shape
    Cout, Cin, kh, kw = conv_w.shape
    assert (Cin, kh, kw) == (C, 1, 1), "only the default 1x1/stride-1 conv path"
    HW = H * W

    t_hw, n_t = _choose_spatial_tile(N, HW)
    ragged = (HW % t_hw) != 0

    x3 = x_nchw.reshape(N, C, HW)  # free reshape, stays in NCHW order

    # ---------------- pass 1: per-channel sum & sum-of-squares -------------
    # Single read of x; per-tile partials are reduced in (tiny) JAX glue.
    def stats_kernel(x_ref, part_ref):
        x = x_ref[0].astype(jnp.float32)                       # (C, t_hw)
        if ragged:
            col = (jax.lax.broadcasted_iota(jnp.int32, x.shape, 1)
                   + pl.program_id(1) * t_hw)
            x = jnp.where(col < HW, x, 0.0)                    # mask padded lanes
        part_ref[0, 0, :, 0:1] = jnp.sum(x, axis=1, keepdims=True)
        part_ref[0, 0, :, 1:2] = jnp.sum(x * x, axis=1, keepdims=True)

    partials = pl.pallas_call(
        stats_kernel,
        out_shape=jax.ShapeDtypeStruct((N, n_t, C, 2), jnp.float32),
        grid=(N, n_t),
        in_specs=[pl.BlockSpec((1, C, t_hw), lambda n, t: (n, 0, t))],
        out_specs=pl.BlockSpec((1, 1, C, 2), lambda n, t: (n, t, 0, 0)),
        compiler_params=pltpu.CompilerParams(
            dimension_semantics=("parallel", "parallel"),
            vmem_limit_bytes=_VMEM_LIMIT_BYTES),
    )(x3)

    sums = jnp.sum(partials, axis=(0, 1))                      # (C, 2)
    count = N * HW
    mean = sums[:, 0] / count
    ex2 = sums[:, 1] / count
    # Biased variance via E[x^2] - mean^2 (single pass).  NOTE: can lose
    # precision for data with |mean| >> std; fine for normalized activations.
    var = ex2 - mean * mean
    scale = gamma.astype(jnp.float32) / jnp.sqrt(var + eps)    # (C,)
    shift = beta.astype(jnp.float32) - mean * scale            # (C,)

    w = conv_w.reshape(Cout, C).astype(jnp.float32)            # (Cout, Cin)
    b = conv_b.reshape(Cout, 1).astype(jnp.float32)            # (Cout, 1)
    scale2 = scale.reshape(C, 1)
    shift2 = shift.reshape(C, 1)

    # ------------- pass 2: normalize -> ReLU -> 1x1 conv (matmul) ----------
    # Kept in f32: kernel is HBM-bound at these channel counts and v5e's VPU
    # has no bf16; for large Cin/Cout a bf16 cast before the dot would help.
    def main_kernel(x_ref, scale_ref, shift_ref, w_ref, b_ref, o_ref):
        x = x_ref[0].astype(jnp.float32)                       # (C, t_hw)
        xr = jnp.maximum(x * scale_ref[...] + shift_ref[...], 0.0)
        y = jnp.dot(w_ref[...], xr,
                    preferred_element_type=jnp.float32) + b_ref[...]
        o_ref[0] = y.astype(o_ref.dtype)                       # (Cout, t_hw)

    out3 = pl.pallas_call(
        main_kernel,
        out_shape=jax.ShapeDtypeStruct((N, Cout, HW), x_nchw.dtype),
        grid=(N, n_t),
        in_specs=[
            pl.BlockSpec((1, C, t_hw), lambda n, t: (n, 0, t)),   # x tile
            pl.BlockSpec((C, 1), lambda n, t: (0, 0)),            # BN scale
            pl.BlockSpec((C, 1), lambda n, t: (0, 0)),            # BN shift
            pl.BlockSpec((Cout, C), lambda n, t: (0, 0)),          # conv weight
            pl.BlockSpec((Cout, 1), lambda n, t: (0, 0)),          # conv bias
        ],
        out_specs=pl.BlockSpec((1, Cout, t_hw), lambda n, t: (n, 0, t)),
        compiler_params=pltpu.CompilerParams(
            dimension_semantics=("parallel", "parallel"),
            vmem_limit_bytes=_VMEM_LIMIT_BYTES),
    )(x3, scale2, shift2, w, b)

    return out3.reshape(N, Cout, H, W)


def _reference(x_nchw, gamma, beta, conv_w, conv_b, eps=1e-5):
    # Pure-JAX reference mirroring PyTorch BatchNorm2d(train) -> ReLU -> Conv2d(1x1).
    xf = x_nchw.astype(jnp.float32)
    mean = jnp.mean(xf, axis=(0, 2, 3), keepdims=True)
    var = jnp.var(xf, axis=(0, 2, 3), keepdims=True)
    xn = (xf - mean) / jnp.sqrt(var + eps)
    xn = xn * gamma.reshape(1, -1, 1, 1) + beta.reshape(1, -1, 1, 1)
    xr = jnp.maximum(xn, 0.0)
    w = conv_w.reshape(conv_w.shape[0], conv_w.shape[1])      # (Cout, Cin)
    y = jnp.einsum("nchw,oc->nohw", xr, w) + conv_b.reshape(1, -1, 1, 1)
    return y.astype(x_nchw.dtype)


if __name__ == "__main__":
    in_channels, out_channels = 4, 8
    N, H, W = 2, 16, 16

    key = jax.random.PRNGKey(0)
    kx, kg, kb, kw, kc = jax.random.split(key, 5)

    x = jax.random.normal(kx, (N, in_channels, H, W), dtype=jnp.float32)
    gamma = 1.0 + 0.1 * jax.random.normal(kg, (in_channels,), jnp.float32)
    beta = 0.1 * jax.random.normal(kb, (in_channels,), jnp.float32)
    conv_w = 0.1 * jax.random.normal(
        kw, (out_channels, in_channels, 1, 1), jnp.float32)
    conv_b = 0.1 * jax.random.normal(kc, (out_channels,), jnp.float32)

    fn = jax.jit(bn_relu_conv)
    out = jax.block_until_ready(fn(x, gamma, beta, conv_w, conv_b))

    ref = _reference(x, gamma, beta, conv_w, conv_b)
    assert out.shape == (N, out_channels, H, W), out.shape
    assert jnp.allclose(out, ref, atol=1e-4, rtol=1e-4), float(
        jnp.max(jnp.abs(out - ref)))

    print("KERNEL_OK")
</pallas_src>

<mosaic_0001>
module attributes {stable_mosaic.version = 11 : i64} {
  func.func @stats_kernel(%arg0: i32, %arg1: i32, %arg2: memref<1x4x256xf32, #tpu.memory_space<vmem>>, %arg3: memref<1x1x4x2xf32, #tpu.memory_space<vmem>>) attributes {dimension_semantics = [#tpu.dimension_semantics<parallel>, #tpu.dimension_semantics<parallel>], iteration_bounds = array<i64: 2, 1>, scalar_prefetch = 0 : i64, scratch_operands = 0 : i64, tpu.core_type = #tpu.core_type<tc>, window_params = [{transform_indices = @transform_0, window_bounds = array<i64: 1, 4, 256>}, {transform_indices = @transform_1, window_bounds = array<i64: 1, 1, 4, 2>}]} {
    %c0 = arith.constant 0 : index
    %c0_0 = arith.constant 0 : index
    %c0_1 = arith.constant 0 : index
    %0 = vector.load %arg2[%c0, %c0_0, %c0_1] : memref<1x4x256xf32, #tpu.memory_space<vmem>>, vector<1x4x256xf32>
    %1 = vector.shape_cast %0 : vector<1x4x256xf32> to vector<4x256xf32>
    %cst = arith.constant dense<0.000000e+00> : vector<4xf32>
    %2 = vector.multi_reduction <add>, %1, %cst [1] : vector<4x256xf32> to vector<4xf32>
    %3 = vector.shape_cast %2 : vector<4xf32> to vector<4x1xf32>
    %c0_2 = arith.constant 0 : index
    %c0_3 = arith.constant 0 : index
    %c0_4 = arith.constant 0 : index
    %c0_5 = arith.constant 0 : index
    %4 = vector.load %arg3[%c0_2, %c0_3, %c0_4, %c0_5] : memref<1x1x4x2xf32, #tpu.memory_space<vmem>>, vector<1x1x4x1xf32>
    %5 = vector.shape_cast %4 : vector<1x1x4x1xf32> to vector<4x1xf32>
    %6 = vector.shape_cast %3 : vector<4x1xf32> to vector<1x1x4x1xf32>
    tpu.vector_store %arg3[%c0_2, %c0_3, %c0_4, %c0_5], %6 {strides = array<i32>} : memref<1x1x4x2xf32, #tpu.memory_space<vmem>>, vector<1x1x4x1xf32>,
    %7 = arith.mulf %1, %1 : vector<4x256xf32>
    %cst_6 = arith.constant dense<0.000000e+00> : vector<4xf32>
    %8 = vector.multi_reduction <add>, %7, %cst_6 [1] : vector<4x256xf32> to vector<4xf32>
    %9 = vector.shape_cast %8 : vector<4xf32> to vector<4x1xf32>
    %c0_7 = arith.constant 0 : index
    %c0_8 = arith.constant 0 : index
    %c0_9 = arith.constant 0 : index
    %c1 = arith.constant 1 : index
    %10 = vector.load %arg3[%c0_7, %c0_8, %c0_9, %c1] : memref<1x1x4x2xf32, #tpu.memory_space<vmem>>, vector<1x1x4x1xf32>
    %11 = vector.shape_cast %10 : vector<1x1x4x1xf32> to vector<4x1xf32>
    %12 = vector.shape_cast %9 : vector<4x1xf32> to vector<1x1x4x1xf32>
    tpu.vector_store %arg3[%c0_7, %c0_8, %c0_9, %c1], %12 {strides = array<i32>} : memref<1x1x4x2xf32, #tpu.memory_space<vmem>>, vector<1x1x4x1xf32>,
    return
  }
  func.func @transform_0(%arg0: i32, %arg1: i32) -> (i32, i32, i32) {
    %c0_i32 = arith.constant 0 : i32
    %c0_i32_0 = arith.constant 0 : i32
    return %arg0, %c0_i32, %arg1 : i32, i32, i32
  }
  func.func @transform_1(%arg0: i32, %arg1: i32) -> (i32, i32, i32, i32) {
    %c0_i32 = arith.constant 0 : i32
    %c0_i32_0 = arith.constant 0 : i32
    %c0_i32_1 = arith.constant 0 : i32
    return %arg0, %arg1, %c0_i32, %c0_i32_0 : i32, i32, i32, i32
  }
}

module attributes {stable_mosaic.version = 11 : i64} {
  func.func @main_kernel(%arg0: i32, %arg1: i32, %arg2: memref<1x4x256xf32, #tpu.memory_space<vmem>>, %arg3: memref<4x1xf32, #tpu.memory_space<vmem>>, %arg4: memref<4x1xf32, #tpu.memory_space<vmem>>, %arg5: memref<8x4xf32, #tpu.memory_space<vmem>>, %arg6: memref<8x1xf32, #tpu.memory_space<vmem>>, %arg7: memref<1x8x256xf32, #tpu.memory_space<vmem>>) attributes {dimension_semantics = [#tpu.dimension_semantics<parallel>, #tpu.dimension_semantics<parallel>], iteration_bounds = array<i64: 2, 1>, scalar_prefetch = 0 : i64, scratch_operands = 0 : i64, tpu.core_type = #tpu.core_type<tc>, window_params = [{transform_indices = @transform_0, window_bounds = array<i64: 1, 4, 256>}, {pipeline_mode = #tpu.pipeline_mode<synchronous>, transform_indices = @transform_1, window_bounds = array<i64: 4, 1>}, {pipeline_mode = #tpu.pipeline_mode<synchronous>, transform_indices = @transform_2, window_bounds = array<i64: 4, 1>}, {pipeline_mode = #tpu.pipeline_mode<synchronous>, transform_indices = @transform_3, window_bounds = array<i64: 8, 4>}, {pipeline_mode = #tpu.pipeline_mode<synchronous>, transform_indices = @transform_4, window_bounds = array<i64: 8, 1>}, {transform_indices = @transform_5, window_bounds = array<i64: 1, 8, 256>}]} {
    %c0 = arith.constant 0 : index
    %c0_0 = arith.constant 0 : index
    %c0_1 = arith.constant 0 : index
    %0 = vector.load %arg2[%c0, %c0_0, %c0_1] : memref<1x4x256xf32, #tpu.memory_space<vmem>>, vector<1x4x256xf32>
    %1 = vector.shape_cast %0 : vector<1x4x256xf32> to vector<4x256xf32>
    %c0_2 = arith.constant 0 : index
    %c0_3 = arith.constant 0 : index
    %2 = vector.load %arg3[%c0_2, %c0_3] : memref<4x1xf32, #tpu.memory_space<vmem>>, vector<4x1xf32>
    %3 = vector.broadcast %2 : vector<4x1xf32> to vector<4x256xf32>
    %4 = arith.mulf %1, %3 : vector<4x256xf32>
    %c0_4 = arith.constant 0 : index
    %c0_5 = arith.constant 0 : index
    %5 = vector.load %arg4[%c0_4, %c0_5] : memref<4x1xf32, #tpu.memory_space<vmem>>, vector<4x1xf32>
    %6 = vector.broadcast %5 : vector<4x1xf32> to vector<4x256xf32>
    %7 = arith.addf %4, %6 : vector<4x256xf32>
    %cst = arith.constant 0.000000e+00 : f32
    %8 = vector.broadcast %cst : f32 to vector<4x256xf32>
    %9 = arith.maximumf %7, %8 : vector<4x256xf32>
    %c0_6 = arith.constant 0 : index
    %c0_7 = arith.constant 0 : index
    %10 = vector.load %arg5[%c0_6, %c0_7] : memref<8x4xf32, #tpu.memory_space<vmem>>, vector<8x4xf32>
    %cst_8 = arith.constant dense<0.000000e+00> : vector<8x256xf32>
    %11 = tpu.matmul %10, %9, %cst_8 {dimension_numbers = #tpu.dot_dimension_numbers<[1], [0], [0], [1], [0, 0, 1, 1], [], []>} : vector<8x4xf32>, vector<4x256xf32>, vector<8x256xf32> -> vector<8x256xf32>
    %c0_9 = arith.constant 0 : index
    %c0_10 = arith.constant 0 : index
    %12 = vector.load %arg6[%c0_9, %c0_10] : memref<8x1xf32, #tpu.memory_space<vmem>>, vector<8x1xf32>
    %13 = vector.broadcast %12 : vector<8x1xf32> to vector<8x256xf32>
    %14 = arith.addf %11, %13 : vector<8x256xf32>
    %c0_11 = arith.constant 0 : index
    %c0_12 = arith.constant 0 : index
    %c0_13 = arith.constant 0 : index
    %15 = vector.load %arg7[%c0_11, %c0_12, %c0_13] : memref<1x8x256xf32, #tpu.memory_space<vmem>>, vector<1x8x256xf32>
    %16 = vector.shape_cast %15 : vector<1x8x256xf32> to vector<8x256xf32>
    %17 = vector.shape_cast %14 : vector<8x256xf32> to vector<1x8x256xf32>
    tpu.vector_store %arg7[%c0_11, %c0_12, %c0_13], %17 {strides = array<i32>} : memref<1x8x256xf32, #tpu.memory_space<vmem>>, vector<1x8x256xf32>,
    return
  }
  func.func @transform_0(%arg0: i32, %arg1: i32) -> (i32, i32, i32) {
    %c0_i32 = arith.constant 0 : i32
    %c0_i32_0 = arith.constant 0 : i32
    return %arg0, %c0_i32, %arg1 : i32, i32, i32
  }
  func.func @transform_1(%arg0: i32, %arg1: i32) -> (i32, i32) {
    %c0_i32 = arith.constant 0 : i32
    %c0_i32_0 = arith.constant 0 : i32
    %c0_i32_1 = arith.constant 0 : i32
    return %c0_i32, %c0_i32_0 : i32, i32
  }
  func.func @transform_2(%arg0: i32, %arg1: i32) -> (i32, i32) {
    %c0_i32 = arith.constant 0 : i32
    %c0_i32_0 = arith.constant 0 : i32
    %c0_i32_1 = arith.constant 0 : i32
    return %c0_i32, %c0_i32_0 : i32, i32
  }
  func.func @transform_3(%arg0: i32, %arg1: i32) -> (i32, i32) {
    %c0_i32 = arith.constant 0 : i32
    %c0_i32_0 = arith.constant 0 : i32
    %c0_i32_1 = arith.constant 0 : i32
    return %c0_i32, %c0_i32_0 : i32, i32
  }
  func.func @transform_4(%arg0: i32, %arg1: i32) -> (i32, i32) {
    %c0_i32 = arith.constant 0 : i32
    %c0_i32_0 = arith.constant 0 : i32
    %c0_i32_1 = arith.constant 0 : i32
    return %c0_i32, %c0_i32_0 : i32, i32
  }
  func.func @transform_5(%arg0: i32, %arg1: i32) -> (i32, i32, i32) {
    %c0_i32 = arith.constant 0 : i32
    %c0_i32_0 = arith.constant 0 : i32
    return %arg0, %c0_i32, %arg1 : i32, i32, i32
  }
}

</mosaic_0001>

<llo_original>
// kernel: bn_relu_conv.2
$region0: #{bn_relu_conv.2}
  #allocation0 [shape = 'u32[]', space=smem, size = 0x4, offset = 0x4, fixed_abs, tag = 'smem constant byte address 0x4 - core index']
  #allocation1 [shape = 'u32[144,128]{1,0:T(1,128)}', space=vmem, size = 0x12000, scoped, tag = 'internal scratch']
  %s0 = inlined_call_operand.vmem [shape: f32[2,4,256], index: 0, kind: input, shape index: {}]
  %s1 = inlined_call_operand.vmem [shape: f32[2,1,4,2], index: 1, kind: output, shape index: {}]
  %s2 = sld [smem:[#allocation0]]
  $region37: #{bn_relu_conv.2} parent=0
    _
  %s4 = ssub.s32 1, %s2
  %s5 = scalar_select 0, %s4, %s2
  loop: start=0, step=1, limit=4
  $region2: #{bn_relu_conv.2} parent=0 // loop_pre_header
    _
  $region3: #{bn_relu_conv.2} parent=0 // loop_header
    %s7 = sphi 0, %s11
    %p8 = scmp.ge.s32.totalorder %s7, 4
    %s14 = sphi 0, %s26
    %s15 = sphi 0, %s22
    %s16 = sphi 0, %s14
    %s17 = sphi 0, %s15
    %s18 = sphi 0, %s16
    %s19 = sphi 0, %s17
    %s31 = sphi 0, %s33
    %s34 = sphi 0, %s31
    %s35 = sphi 0, %s34
    %s51 = sphi 0, %s35
    %s59 = sphi 0, %s61
    %s62 = sphi 0, %s59
    %s63 = sphi 0, %s62
    %s79 = sphi 0, %s63
  $region4: #{bn_relu_conv.2} parent=0 // loop_header_branch
    %10 = sbr.rel (%p8) target = $region8
  $region5: #{bn_relu_conv.2} parent=0 // loop_body
    %s12 = ssub.s32 %s7, 1
    %s13 = ssub.s32 %s7, 2
    %s20 = sadd.s32 1, %s15
    %p21 = scmp.ge.s32.totalorder %s20, 1
    %s22 = scalar_select %p21, 0, %s20
    %s23 = sadd.s32 1, %s14
    %s24 = scalar_select %p21, %s23, %s14
    %p25 = scmp.ge.s32.totalorder %s24, 2
    %s26 = scalar_select %p25, 0, %s24
    %s27 = ssub.s32 %s14, %s26
    %s28 = ssub.s32 %s15, %s22
    %s29 = sor.u32 %s27, %s28
    %p30 = scmp.eq.s32.totalorder %s29, 0
    %s32 = sadd.s32 %s31, 1
    %s33 = scalar_select %p30, %s31, %s32
    %p36 = pneg %p30
    %p37 = scmp.eq.s32.totalorder %s7, 1
    %p38 = por %p36, %p37
    %p39 = scmp.ne.s32.totalorder %s31, %s34
    %p40 = scmp.eq.s32.totalorder %s7, 0
    %p41 = por %p39, %p40
    %p42 = scmp.ne.s32.totalorder %s31, %s34
    %p43 = scmp.eq.s32.totalorder %s12, 1
    %p44 = por %p42, %p43
    %p45 = scmp.ne.s32.totalorder %s34, %s35
    %p46 = scmp.eq.s32.totalorder %s12, 0
    %p47 = por %p45, %p46
    %p48 = scmp.ne.s32.totalorder %s34, %s35
    %p49 = scmp.eq.s32.totalorder %s13, 1
    %p50 = por %p48, %p49
    %p52 = scmp.ne.s32.totalorder %s35, %s51
    %p53 = scmp.eq.s32.totalorder %s13, 0
    %p54 = por %p52, %p53
    %s55 = ssub.s32 %s14, %s26
    %s56 = ssub.s32 %s15, %s22
    %s57 = sor.u32 %s55, %s56
    %p58 = scmp.eq.s32.totalorder %s57, 0
    %s60 = sadd.s32 %s59, 1
    %s61 = scalar_select %p58, %s59, %s60
    %p64 = pneg %p58
    %p65 = scmp.eq.s32.totalorder %s7, 1
    %p66 = por %p64, %p65
    %p67 = scmp.ne.s32.totalorder %s59, %s62
    %p68 = scmp.eq.s32.totalorder %s7, 0
    %p69 = por %p67, %p68
    %p70 = scmp.ne.s32.totalorder %s59, %s62
    %p71 = scmp.eq.s32.totalorder %s12, 1
    %p72 = por %p70, %p71
    %p73 = scmp.ne.s32.totalorder %s62, %s63
    %p74 = scmp.eq.s32.totalorder %s12, 0
    %p75 = por %p73, %p74
    %p76 = scmp.ne.s32.totalorder %s62, %s63
    %p77 = scmp.eq.s32.totalorder %s13, 1
    %p78 = por %p76, %p77
    %p80 = scmp.ne.s32.totalorder %s63, %s79
    %p81 = scmp.eq.s32.totalorder %s13, 0
    %p82 = por %p80, %p81
    %p83 = scmp.le.s32.totalorder 1, %s7
    %p84 = scmp.lt.s32.totalorder %s7, 3
    %p85 = pnand %p83, %p84
    %p86 = pneg %p85
    // Predicated region
    $region9: #{bn_relu_conv.2} parent=5 // pred_check
      _
    $region10: #{bn_relu_conv.2} parent=5 // pred_check_branch
      %88 = sbr.rel (%p85) target = $region12
    $region11: #{bn_relu_conv.2} parent=5 // pred_region
      %s89 = ssub.s32 %s7, 1
    $region12: #{bn_relu_conv.2} parent=5 // pred_fallthru
      _
    %p90 = scmp.lt.s32.totalorder %s7, 2
    // Predicated region
    $region13: #{bn_relu_conv.2} parent=5 // pred_check
      %p91 = pneg %p90
    $region14: #{bn_relu_conv.2} parent=5 // pred_check_branch
      %93 = sbr.rel (%p91) target = $region16
    $region15: #{bn_relu_conv.2} parent=5 // pred_region
      // Predicated region
      $region17: #{bn_relu_conv.2} parent=15 // pred_check
        %p94 = pneg %p41
      $region18: #{bn_relu_conv.2} parent=15 // pred_check_branch
        %96 = sbr.rel (%p94) target = $region20
      $region19: #{bn_relu_conv.2} parent=15 // pred_region
        %s97 = smul.u32 2, %s15
        %p98 = scmp.lt.s32.totalorder %s14, 1
        %s99 = scalar_select %p98, %s14, 1
        %p100 = scmp.lt.s32.totalorder %s97, 1
        %s101 = scalar_select %p100, %s97, 1
        %s102 = smul.addr %s99, 2
        %s103 = sadd.s32 %s101, %s102
        %s104 = smul.addr %s103, 4
        %s105 = scalar_lea.vmem %s0, %s104
        %s106 = smul.u32 2, %s15
      $region20: #{bn_relu_conv.2} parent=15 // pred_fallthru
        _
    $region16: #{bn_relu_conv.2} parent=5 // pred_fallthru
      _
    %p107 = scmp.le.s32.totalorder 1, %s7
    %p108 = scmp.lt.s32.totalorder %s7, 3
    %p109 = pnand %p107, %p108
    %p110 = pneg %p109
    // Predicated region
    $region21: #{bn_relu_conv.2} parent=5 // pred_check
      _
    $region22: #{bn_relu_conv.2} parent=5 // pred_check_branch
      %112 = sbr.rel (%p109) target = $region24
    $region23: #{bn_relu_conv.2} parent=5 // pred_region
      %s113 = ssub.s32 %s7, 1
      %s114 = smul.u32 2, %s17
      %p115 = scmp.lt.s32.totalorder %s16, 1
      %s116 = scalar_select %p115, %s16, 1
      %p117 = scmp.lt.s32.totalorder %s114, 1
      %s118 = scalar_select %p117, %s114, 1
      %s119 = smul.addr %s116, 2
      %s120 = sadd.s32 %s118, %s119
      %s121 = smul.addr %s120, 4
      %s122 = scalar_lea.vmem %s0, %s121
      %p123 = pneg %p47
      %p124 = pneg %p44
      %p125 = pneg %p75
      %p126 = pneg %p72
      %p127 = scmp.lt.s32.totalorder %s16, 1
      %s128 = scalar_select %p127, %s16, 1
      %p129 = scmp.lt.s32.totalorder %s17, 0
      %s130 = scalar_select %p129, %s17, 0
      %s131 = sadd.s32 %s130, %s128
      %s132 = smul.addr %s131, 4
      %s133 = scalar_lea.vmem %s1, %s132
      %s134 = smul.u32 2, %s17
      %p135 = scmp.lt.s32.totalorder %s16, 1
      %s136 = scalar_select %p135, %s16, 1
      %p137 = scmp.lt.s32.totalorder %s134, 1
      %s138 = scalar_select %p137, %s134, 1
      %s139 = smul.addr %s136, 2
      %s140 = sadd.s32 %s138, %s139
      %s141 = smul.addr %s140, 4
      %s142 = scalar_lea.vmem %s0, %s141
      %s143 = smul.u32 2, %s17
      %p144 = scmp.lt.s32.totalorder %s16, 1
      %s145 = scalar_select %p144, %s16, 1
      %p146 = scmp.lt.s32.totalorder %s17, 0
      %s147 = scalar_select %p146, %s17, 0
      %s148 = sadd.s32 %s147, %s145
      %s149 = smul.addr %s148, 4
      %s150 = scalar_lea.vmem %s1, %s149
      %v151 = vld [vmem:[%s142] sm:$0xff]
      %v153 = vcombine.high %v151, %v151
      %vm155 = vcmask 1043456
      %v156 = vsel %vm155, %v151, 0.0
      %v157 = vsel %vm155, %v153, 0.0
      %v158 = vadd.f32 %v156, %v157
      %159 = vadd.xlane.f32.xlu0 %v158
      %v160 = vpop.xlane.xlu0 %159
      %vm161 = vcmask 3072
      %162 = vst.msk [vmem:[%s150] sm:$0xf] %vm161, %v160
      %v163 = vmul.f32 %v151, %v151
      %v165 = vcombine.high %v163, %v163
      %v167 = vsel %vm155, %v163, 0.0
      %v168 = vsel %vm155, %v165, 0.0
      %v169 = vadd.f32 %v167, %v168
      %170 = vadd.xlane.f32.xlu0 %v169
      %v171 = vpop.xlane.xlu0 %170
      %vm172 = vcmask 11272
      %173 = vst.msk [vmem:[%s150] sm:$0xf] %vm172, %v171
      %p174 = scmp.lt.s32.totalorder %s16, 1
      %s175 = scalar_select %p174, %s16, 1
      %p176 = scmp.lt.s32.totalorder %s17, 0
      %s177 = scalar_select %p176, %s17, 0
      %s178 = sadd.s32 %s177, %s175
      %s179 = smul.addr %s178, 4
      %s180 = scalar_lea.vmem %s1, %s179
      // Predicated region
      $region25: #{bn_relu_conv.2} parent=23 // pred_check
        %p181 = pneg %p72
      $region26: #{bn_relu_conv.2} parent=23 // pred_check_branch
        %183 = sbr.rel (%p181) target = $region28
      $region27: #{bn_relu_conv.2} parent=23 // pred_region
        _
      $region28: #{bn_relu_conv.2} parent=23 // pred_fallthru
        _
    $region24: #{bn_relu_conv.2} parent=5 // pred_fallthru
      _
    %p184 = scmp.le.s32.totalorder 2, %s7
    // Predicated region
    $region29: #{bn_relu_conv.2} parent=5 // pred_check
      %p185 = pneg %p184
    $region30: #{bn_relu_conv.2} parent=5 // pred_check_branch
      %187 = sbr.rel (%p185) target = $region32
    $region31: #{bn_relu_conv.2} parent=5 // pred_region
      %s188 = ssub.s32 %s7, 2
      // Predicated region
      $region33: #{bn_relu_conv.2} parent=31 // pred_check
        %p189 = pneg %p78
      $region34: #{bn_relu_conv.2} parent=31 // pred_check_branch
        %191 = sbr.rel (%p189) target = $region36
      $region35: #{bn_relu_conv.2} parent=31 // pred_region
        %p192 = scmp.lt.s32.totalorder %s18, 1
        %s193 = scalar_select %p192, %s18, 1
        %p194 = scmp.lt.s32.totalorder %s19, 0
        %s195 = scalar_select %p194, %s19, 0
        %s196 = sadd.s32 %s195, %s193
        %s197 = smul.addr %s196, 4
        %s198 = scalar_lea.vmem %s1, %s197
      $region36: #{bn_relu_conv.2} parent=31 // pred_fallthru
        _
    $region32: #{bn_relu_conv.2} parent=5 // pred_fallthru
      _
  $region6: #{bn_relu_conv.2} parent=0 // loop_footer
    %s11 = sadd.s32 1, %s7
  $region7: #{bn_relu_conv.2} parent=0 // loop_footer_branch
    %6 = sbr.rel target = $region3
  $region8: #{bn_relu_conv.2} parent=0 // loop_exit
    _

// kernel: bn_relu_conv.3
$region0: #{bn_relu_conv.3}
  #allocation0 [shape = 'u32[]', space=smem, size = 0x4, offset = 0x4, fixed_abs, tag = 'smem constant byte address 0x4 - core index']
  #allocation1 [shape = 'u32[144,128]{1,0:T(1,128)}', space=vmem, size = 0x12000, scoped, tag = 'internal scratch']
  %s0 = inlined_call_operand.vmem [shape: f32[2,4,256], index: 0, kind: input, shape index: {}]
  %s1 = inlined_call_operand.vmem [shape: f32[4,1], index: 1, kind: input, shape index: {}]
  %s2 = inlined_call_operand.vmem [shape: f32[4,1], index: 2, kind: input, shape index: {}]
  %s3 = inlined_call_operand.vmem [shape: f32[8,4], index: 3, kind: input, shape index: {}]
  %s4 = inlined_call_operand.vmem [shape: f32[8,1], index: 4, kind: input, shape index: {}]
  %s5 = inlined_call_operand.vmem [shape: f32[2,8,256], index: 5, kind: output, shape index: {}]
  %s6 = sld [smem:[#allocation0]]
  $region53: #{bn_relu_conv.3} parent=0
    _
  %s8 = ssub.s32 1, %s6
  %s9 = scalar_select 0, %s8, %s6
  loop: start=0, step=1, limit=4
  $region2: #{bn_relu_conv.3} parent=0 // loop_pre_header
    _
  $region3: #{bn_relu_conv.3} parent=0 // loop_header
    %s11 = sphi 0, %s15
    %p12 = scmp.ge.s32.totalorder %s11, 4
    %s18 = sphi 0, %s30
    %s19 = sphi 0, %s26
    %s20 = sphi 0, %s18
    %s21 = sphi 0, %s19
    %s22 = sphi 0, %s20
    %s23 = sphi 0, %s21
    %s35 = sphi 0, %s37
    %s38 = sphi 0, %s35
    %s39 = sphi 0, %s38
    %s55 = sphi 0, %s39
    %s59 = sphi 0, %s59
    %s61 = sphi 0, %s59
    %s62 = sphi 0, %s61
    %s76 = sphi 0, %s62
    %s80 = sphi 0, %s80
    %s82 = sphi 0, %s80
    %s83 = sphi 0, %s82
    %s97 = sphi 0, %s83
    %s101 = sphi 0, %s101
    %s103 = sphi 0, %s101
    %s104 = sphi 0, %s103
    %s118 = sphi 0, %s104
    %s122 = sphi 0, %s122
    %s124 = sphi 0, %s122
    %s125 = sphi 0, %s124
    %s139 = sphi 0, %s125
    %s147 = sphi 0, %s149
    %s150 = sphi 0, %s147
    %s151 = sphi 0, %s150
    %s167 = sphi 0, %s151
  $region4: #{bn_relu_conv.3} parent=0 // loop_header_branch
    %14 = sbr.rel (%p12) target = $region8
  $region5: #{bn_relu_conv.3} parent=0 // loop_body
    %s16 = ssub.s32 %s11, 1
    %s17 = ssub.s32 %s11, 2
    %s24 = sadd.s32 1, %s19
    %p25 = scmp.ge.s32.totalorder %s24, 1
    %s26 = scalar_select %p25, 0, %s24
    %s27 = sadd.s32 1, %s18
    %s28 = scalar_select %p25, %s27, %s18
    %p29 = scmp.ge.s32.totalorder %s28, 2
    %s30 = scalar_select %p29, 0, %s28
    %s31 = ssub.s32 %s18, %s30
    %s32 = ssub.s32 %s19, %s26
    %s33 = sor.u32 %s31, %s32
    %p34 = scmp.eq.s32.totalorder %s33, 0
    %s36 = sadd.s32 %s35, 1
    %s37 = scalar_select %p34, %s35, %s36
    %p40 = pneg %p34
    %p41 = scmp.eq.s32.totalorder %s11, 1
    %p42 = por %p40, %p41
    %p43 = scmp.ne.s32.totalorder %s35, %s38
    %p44 = scmp.eq.s32.totalorder %s11, 0
    %p45 = por %p43, %p44
    %p46 = scmp.ne.s32.totalorder %s35, %s38
    %p47 = scmp.eq.s32.totalorder %s16, 1
    %p48 = por %p46, %p47
    %p49 = scmp.ne.s32.totalorder %s38, %s39
    %p50 = scmp.eq.s32.totalorder %s16, 0
    %p51 = por %p49, %p50
    %p52 = scmp.ne.s32.totalorder %s38, %s39
    %p53 = scmp.eq.s32.totalorder %s17, 1
    %p54 = por %p52, %p53
    %p56 = scmp.ne.s32.totalorder %s39, %s55
    %p57 = scmp.eq.s32.totalorder %s17, 0
    %p58 = por %p56, %p57
    %s60 = sadd.s32 %s59, 1
    %p63 = scmp.eq.s32.totalorder %s11, 1
    %p64 = scmp.ne.s32.totalorder %s59, %s61
    %p65 = scmp.eq.s32.totalorder %s11, 0
    %p66 = por %p64, %p65
    %p67 = scmp.ne.s32.totalorder %s59, %s61
    %p68 = scmp.eq.s32.totalorder %s16, 1
    %p69 = por %p67, %p68
    %p70 = scmp.ne.s32.totalorder %s61, %s62
    %p71 = scmp.eq.s32.totalorder %s16, 0
    %p72 = por %p70, %p71
    %p73 = scmp.ne.s32.totalorder %s61, %s62
    %p74 = scmp.eq.s32.totalorder %s17, 1
    %p75 = por %p73, %p74
    %p77 = scmp.ne.s32.totalorder %s62, %s76
    %p78 = scmp.eq.s32.totalorder %s17, 0
    %p79 = por %p77, %p78
    %s81 = sadd.s32 %s80, 1
    %p84 = scmp.eq.s32.totalorder %s11, 1
    %p85 = scmp.ne.s32.totalorder %s80, %s82
    %p86 = scmp.eq.s32.totalorder %s11, 0
    %p87 = por %p85, %p86
    %p88 = scmp.ne.s32.totalorder %s80, %s82
    %p89 = scmp.eq.s32.totalorder %s16, 1
    %p90 = por %p88, %p89
    %p91 = scmp.ne.s32.totalorder %s82, %s83
    %p92 = scmp.eq.s32.totalorder %s16, 0
    %p93 = por %p91, %p92
    %p94 = scmp.ne.s32.totalorder %s82, %s83
    %p95 = scmp.eq.s32.totalorder %s17, 1
    %p96 = por %p94, %p95
    %p98 = scmp.ne.s32.totalorder %s83, %s97
    %p99 = scmp.eq.s32.totalorder %s17, 0
    %p100 = por %p98, %p99
    %s102 = sadd.s32 %s101, 1
    %p105 = scmp.eq.s32.totalorder %s11, 1
    %p106 = scmp.ne.s32.totalorder %s101, %s103
    %p107 = scmp.eq.s32.totalorder %s11, 0
    %p108 = por %p106, %p107
    %p109 = scmp.ne.s32.totalorder %s101, %s103
    %p110 = scmp.eq.s32.totalorder %s16, 1
    %p111 = por %p109, %p110
    %p112 = scmp.ne.s32.totalorder %s103, %s104
    %p113 = scmp.eq.s32.totalorder %s16, 0
    %p114 = por %p112, %p113
    %p115 = scmp.ne.s32.totalorder %s103, %s104
    %p116 = scmp.eq.s32.totalorder %s17, 1
    %p117 = por %p115, %p116
    %p119 = scmp.ne.s32.totalorder %s104, %s118
    %p120 = scmp.eq.s32.totalorder %s17, 0
    %p121 = por %p119, %p120
    %s123 = sadd.s32 %s122, 1
    %p126 = scmp.eq.s32.totalorder %s11, 1
    %p127 = scmp.ne.s32.totalorder %s122, %s124
    %p128 = scmp.eq.s32.totalorder %s11, 0
    %p129 = por %p127, %p128
    %p130 = scmp.ne.s32.totalorder %s122, %s124
    %p131 = scmp.eq.s32.totalorder %s16, 1
    %p132 = por %p130, %p131
    %p133 = scmp.ne.s32.totalorder %s124, %s125
    %p134 = scmp.eq.s32.totalorder %s16, 0
    %p135 = por %p133, %p134
    %p136 = scmp.ne.s32.totalorder %s124, %s125
    %p137 = scmp.eq.s32.totalorder %s17, 1
    %p138 = por %p136, %p137
    %p140 = scmp.ne.s32.totalorder %s125, %s139
    %p141 = scmp.eq.s32.totalorder %s17, 0
    %p142 = por %p140, %p141
    %s143 = ssub.s32 %s18, %s30
    %s144 = ssub.s32 %s19, %s26
    %s145 = sor.u32 %s143, %s144
    %p146 = scmp.eq.s32.totalorder %s145, 0
    %s148 = sadd.s32 %s147, 1
    %s149 = scalar_select %p146, %s147, %s148
    %p152 = pneg %p146
    %p153 = scmp.eq.s32.totalorder %s11, 1
    %p154 = por %p152, %p153
    %p155 = scmp.ne.s32.totalorder %s147, %s150
    %p156 = scmp.eq.s32.totalorder %s11, 0
    %p157 = por %p155, %p156
    %p158 = scmp.ne.s32.totalorder %s147, %s150
    %p159 = scmp.eq.s32.totalorder %s16, 1
    %p160 = por %p158, %p159
    %p161 = scmp.ne.s32.totalorder %s150, %s151
    %p162 = scmp.eq.s32.totalorder %s16, 0
    %p163 = por %p161, %p162
    %p164 = scmp.ne.s32.totalorder %s150, %s151
    %p165 = scmp.eq.s32.totalorder %s17, 1
    %p166 = por %p164, %p165
    %p168 = scmp.ne.s32.totalorder %s151, %s167
    %p169 = scmp.eq.s32.totalorder %s17, 0
    %p170 = por %p168, %p169
    %p171 = scmp.le.s32.totalorder 1, %s11
    %p172 = scmp.lt.s32.totalorder %s11, 3
    %p173 = pnand %p171, %p172
    %p174 = pneg %p173
    // Predicated region
    $region9: #{bn_relu_conv.3} parent=5 // pred_check
      _
    $region10: #{bn_relu_conv.3} parent=5 // pred_check_branch
      %176 = sbr.rel (%p173) target = $region12
    $region11: #{bn_relu_conv.3} parent=5 // pred_region
      %s177 = ssub.s32 %s11, 1
      // Predicated region
      $region13: #{bn_relu_conv.3} parent=11 // pred_check
        %p178 = pneg %p72
      $region14: #{bn_relu_conv.3} parent=11 // pred_check_branch
        %180 = sbr.rel (%p178) target = $region16
      $region15: #{bn_relu_conv.3} parent=11 // pred_region
        _
      $region16: #{bn_relu_conv.3} parent=11 // pred_fallthru
        _
      // Predicated region
      $region17: #{bn_relu_conv.3} parent=11 // pred_check
        %p181 = pneg %p93
      $region18: #{bn_relu_conv.3} parent=11 // pred_check_branch
        %183 = sbr.rel (%p181) target = $region20
      $region19: #{bn_relu_conv.3} parent=11 // pred_region
        _
      $region20: #{bn_relu_conv.3} parent=11 // pred_fallthru
        _
      // Predicated region
      $region21: #{bn_relu_conv.3} parent=11 // pred_check
        %p184 = pneg %p114
      $region22: #{bn_relu_conv.3} parent=11 // pred_check_branch
        %186 = sbr.rel (%p184) target = $region24
      $region23: #{bn_relu_conv.3} parent=11 // pred_region
        _
      $region24: #{bn_relu_conv.3} parent=11 // pred_fallthru
        _
      // Predicated region
      $region25: #{bn_relu_conv.3} parent=11 // pred_check
        %p187 = pneg %p135
      $region26: #{bn_relu_conv.3} parent=11 // pred_check_branch
        %189 = sbr.rel (%p187) target = $region28
      $region27: #{bn_relu_conv.3} parent=11 // pred_region
        _
      $region28: #{bn_relu_conv.3} parent=11 // pred_fallthru
        _
    $region12: #{bn_relu_conv.3} parent=5 // pred_fallthru
      _
    %p190 = scmp.lt.s32.totalorder %s11, 2
    // Predicated region
    $region29: #{bn_relu_conv.3} parent=5 // pred_check
      %p191 = pneg %p190
    $region30: #{bn_relu_conv.3} parent=5 // pred_check_branch
      %193 = sbr.rel (%p191) target = $region32
    $region31: #{bn_relu_conv.3} parent=5 // pred_region
      // Predicated region
      $region33: #{bn_relu_conv.3} parent=31 // pred_check
        %p194 = pneg %p45
      $region34: #{bn_relu_conv.3} parent=31 // pred_check_branch
        %196 = sbr.rel (%p194) target = $region36
      $region35: #{bn_relu_conv.3} parent=31 // pred_region
        %s197 = smul.u32 2, %s19
        %p198 = scmp.lt.s32.totalorder %s18, 1
        %s199 = scalar_select %p198, %s18, 1
        %p200 = scmp.lt.s32.totalorder %s197, 1
        %s201 = scalar_select %p200, %s197, 1
        %s202 = smul.addr %s199, 2
        %s203 = sadd.s32 %s201, %s202
        %s204 = smul.addr %s203, 4
        %s205 = scalar_lea.vmem %s0, %s204
        %s206 = smul.u32 2, %s19
      $region36: #{bn_relu_conv.3} parent=31 // pred_fallthru
        _
    $region32: #{bn_relu_conv.3} parent=5 // pred_fallthru
      _
    %p207 = scmp.le.s32.totalorder 1, %s11
    %p208 = scmp.lt.s32.totalorder %s11, 3
    %p209 = pnand %p207, %p208
    %p210 = pneg %p209
    // Predicated region
    $region37: #{bn_relu_conv.3} parent=5 // pred_check
      _
    $region38: #{bn_relu_conv.3} parent=5 // pred_check_branch
      %212 = sbr.rel (%p209) target = $region40
    $region39: #{bn_relu_conv.3} parent=5 // pred_region
      %s213 = ssub.s32 %s11, 1
      %s214 = smul.u32 2, %s21
      %p215 = scmp.lt.s32.totalorder %s20, 1
      %s216 = scalar_select %p215, %s20, 1
      %p217 = scmp.lt.s32.totalorder %s214, 1
      %s218 = scalar_select %p217, %s214, 1
      %s219 = smul.addr %s216, 2
      %s220 = sadd.s32 %s218, %s219
      %s221 = smul.addr %s220, 4
      %s222 = scalar_lea.vmem %s0, %s221
      %p223 = pneg %p51
      %p224 = pneg %p48
      %p225 = pneg %p72
      %p226 = pneg %p69
      %p227 = pneg %p93
      %p228 = pneg %p90
      %p229 = pneg %p114
      %p230 = pneg %p111
      %p231 = pneg %p135
      %p232 = pneg %p132
      %p233 = pneg %p163
      %p234 = pneg %p160
      %s235 = smul.u32 2, %s21
      %p236 = scmp.lt.s32.totalorder %s20, 1
      %s237 = scalar_select %p236, %s20, 1
      %p238 = scmp.lt.s32.totalorder %s235, 1
      %s239 = scalar_select %p238, %s235, 1
      %s240 = smul.addr %s237, 2
      %s241 = sadd.s32 %s239, %s240
      %s242 = smul.addr %s241, 8
      %s243 = scalar_lea.vmem %s5, %s242
      %s244 = smul.u32 2, %s21
      %p245 = scmp.lt.s32.totalorder %s20, 1
      %s246 = scalar_select %p245, %s20, 1
      %p247 = scmp.lt.s32.totalorder %s244, 1
      %s248 = scalar_select %p247, %s244, 1
      %s249 = smul.addr %s246, 2
      %s250 = sadd.s32 %s248, %s249
      %s251 = smul.addr %s250, 4
      %s252 = scalar_lea.vmem %s0, %s251
      %s253 = smul.u32 2, %s21
      %s254 = smul.u32 2, %s21
      %p255 = scmp.lt.s32.totalorder %s20, 1
      %s256 = scalar_select %p255, %s20, 1
      %p257 = scmp.lt.s32.totalorder %s254, 1
      %s258 = scalar_select %p257, %s254, 1
      %s259 = smul.addr %s256, 2
      %s260 = sadd.s32 %s258, %s259
      %s261 = smul.addr %s260, 8
      %s262 = scalar_lea.vmem %s5, %s261
      %s263 = smul.u32 2, %s21
      %v264 = vld [vmem:[%s252] sm:$0xff]
      %v265 = vld [vmem:[%s1] sm:$0xf]
      %267 = vset.pattern.permute.xlu0 0
      %268 = vperm.xlu0 %267, %v265
      %v269 = vpop.permute.xlu0 %268
      %v271 = vunpack.c.l.s4 839922192
      %v272 = vunpack.c.0.s8 %v271
      %v273 = vlaneseq
      %v274 = vshrl.u32 %v273, 7
      %v275 = vsub.s32 %v272, %v274
      %v276 = vrot.slane %v269, %v275
      %v278 = vmul.f32 %v264, %v276
      %v279 = vld [vmem:[%s2] sm:$0xf]
      %281 = vset.pattern.permute.xlu0 0
      %282 = vperm.xlu0 %281, %v279
      %v283 = vpop.permute.xlu0 %282
      %v285 = vunpack.c.l.s4 839922192
      %v286 = vunpack.c.0.s8 %v285
      %v287 = vlaneseq
      %v288 = vshrl.u32 %v287, 7
      %v289 = vsub.s32 %v286, %v288
      %v290 = vrot.slane %v283, %v289
      %v292 = vadd.f32 %v278, %v290
      %v293 = vmax.f32 %v292, 0.0
      %v294 = vld [vmem:[%s3] sm:$0xff]
      %v295 = vld [vmem:[%s4] sm:$0xff]
      %297 = vset.pattern.permute.xlu0 0
      %298 = vperm.xlu0 %297, %v295
      %v299 = vpop.permute.xlu0 %298
      %v302 = vcombine.high %v293, %v293
      %vm303 = vcmask 31744
      %v305 = vsel %vm303, %v294, 0
      %vm307 = vcmask 1043456
      %v308 = vsel %vm307, %v293, 0
      %v310 = vsel %vm307, %v302, 0
      %312 = vmatprep.subr.mxu0 %v310
      %313 = vmatpush1.msra.mxu0 %v308
      %314 = vmatprep.subr.mxu0 0.0
      %315 = vmatpush1.msra.mxu0 0.0
      %316 = vmatprep.subr.mxu0 0.0
      %317 = vmatpush1.msra.mxu0 0.0
      %318 = vmatprep.subr.mxu0 0.0
      %319 = vmatpush1.msra.mxu0 0.0
      %320 = vmatprep.subr.mxu0 0.0
      %321 = vmatpush1.msra.mxu0 0.0
      %322 = vmatprep.subr.mxu0 0.0
      %323 = vmatpush1.msra.mxu0 0.0
      %324 = vmatprep.subr.mxu0 0.0
      %325 = vmatpush1.msra.mxu0 0.0
      %326 = vmatprep.subr.mxu0 0.0
      %327 = vmatpush1.msra.mxu0 0.0
      %328 = vmatprep.subr.mxu0 0.0
      %329 = vmatpush1.msra.mxu0 0.0
      %330 = vmatprep.subr.mxu0 0.0
      %331 = vmatpush1.msra.mxu0 0.0
      %332 = vmatprep.subr.mxu0 0.0
      %333 = vmatpush1.msra.mxu0 0.0
      %334 = vmatprep.subr.mxu0 0.0
      %335 = vmatpush1.msra.mxu0 0.0
      %336 = vmatprep.subr.mxu0 0.0
      %337 = vmatpush1.msra.mxu0 0.0
      %338 = vmatprep.subr.mxu0 0.0
      %339 = vmatpush1.msra.mxu0 0.0
      %340 = vmatprep.subr.mxu0 0.0
      %341 = vmatpush1.msra.mxu0 0.0
      %342 = vmatprep.subr.mxu0 0.0
      %343 = vmatpush1.msra.mxu0 0.0
      %344 = vmatprep.subr.mxu0 0.0
      %345 = vmatpush1.msra.mxu0 0.0
      %346 = vmatprep.subr.mxu0 0.0
      %347 = vmatpush1.msra.mxu0 0.0
      %348 = vmatprep.subr.mxu0 0.0
      %349 = vmatpush1.msra.mxu0 0.0
      %350 = vmatprep.subr.mxu0 0.0
      %351 = vmatpush1.msra.mxu0 0.0
      %352 = vmatprep.subr.mxu0 0.0
      %353 = vmatpush1.msra.mxu0 0.0
      %354 = vmatprep.subr.mxu0 0.0
      %355 = vmatpush1.msra.mxu0 0.0
      %356 = vmatprep.subr.mxu0 0.0
      %357 = vmatpush1.msra.mxu0 0.0
      %358 = vmatprep.subr.mxu0 0.0
      %359 = vmatpush1.msra.mxu0 0.0
      %360 = vmatprep.subr.mxu0 0.0
      %361 = vmatpush1.msra.mxu0 0.0
      %362 = vmatprep.subr.mxu0 0.0
      %363 = vmatpush1.msra.mxu0 0.0
      %364 = vmatprep.subr.mxu0 0.0
      %365 = vmatpush1.msra.mxu0 0.0
      %366 = vmatprep.subr.mxu0 0.0
      %367 = vmatpush1.msra.mxu0 0.0
      %368 = vmatprep.subr.mxu0 0.0
      %369 = vmatpush1.msra.mxu0 0.0
      %370 = vmatprep.subr.mxu0 0.0
      %371 = vmatpush1.msra.mxu0 0.0
      %372 = vmatprep.subr.mxu0 0.0
      %373 = vmatpush1.msra.mxu0 0.0
      %374 = vmatprep.subr.mxu0 0.0
      %375 = vmatpush1.msra.mxu0 0.0
      %376 = vmatprep.mubr.f32.mxu0 0.0
      %377 = vmatmul.mubr.f32.gmra.mrb[0].mxu0 %v305
      %v378 = vpop.f32.mrb[0].mxu0
      %v379 = vadd.f32 %v299, %v378
      %v380 = vpop.f32.mrb[0].mxu0
      %v381 = vadd.f32 %v299, %v380
      %382 = vdwg.mxu0
      %383 = vst [vmem:[%s262] sm:$0xff] %v379
      %384 = vst [vmem:[%s262 + $0x8] sm:$0xff] %v381
      %s385 = smul.u32 2, %s21
      %p386 = scmp.lt.s32.totalorder %s20, 1
      %s387 = scalar_select %p386, %s20, 1
      %p388 = scmp.lt.s32.totalorder %s385, 1
      %s389 = scalar_select %p388, %s385, 1
      %s390 = smul.addr %s387, 2
      %s391 = sadd.s32 %s389, %s390
      %s392 = smul.addr %s391, 8
      %s393 = scalar_lea.vmem %s5, %s392
      // Predicated region
      $region41: #{bn_relu_conv.3} parent=39 // pred_check
        %p394 = pneg %p160
      $region42: #{bn_relu_conv.3} parent=39 // pred_check_branch
        %396 = sbr.rel (%p394) target = $region44
      $region43: #{bn_relu_conv.3} parent=39 // pred_region
        %s397 = smul.u32 2, %s21
      $region44: #{bn_relu_conv.3} parent=39 // pred_fallthru
        _
    $region40: #{bn_relu_conv.3} parent=5 // pred_fallthru
      _
    %p398 = scmp.le.s32.totalorder 2, %s11
    // Predicated region
    $region45: #{bn_relu_conv.3} parent=5 // pred_check
      %p399 = pneg %p398
    $region46: #{bn_relu_conv.3} parent=5 // pred_check_branch
      %401 = sbr.rel (%p399) target = $region48
    $region47: #{bn_relu_conv.3} parent=5 // pred_region
      %s402 = ssub.s32 %s11, 2
      // Predicated region
      $region49: #{bn_relu_conv.3} parent=47 // pred_check
        %p403 = pneg %p166
      $region50: #{bn_relu_conv.3} parent=47 // pred_check_branch
        %405 = sbr.rel (%p403) target = $region52
      $region51: #{bn_relu_conv.3} parent=47 // pred_region
        %s406 = smul.u32 2, %s23
        %p407 = scmp.lt.s32.totalorder %s22, 1
        %s408 = scalar_select %p407, %s22, 1
        %p409 = scmp.lt.s32.totalorder %s406, 1
        %s410 = scalar_select %p409, %s406, 1
        %s411 = smul.addr %s408, 2
        %s412 = sadd.s32 %s410, %s411
        %s413 = smul.addr %s412, 8
        %s414 = scalar_lea.vmem %s5, %s413
      $region52: #{bn_relu_conv.3} parent=47 // pred_fallthru
        _
    $region48: #{bn_relu_conv.3} parent=5 // pred_fallthru
      _
  $region6: #{bn_relu_conv.3} parent=0 // loop_footer
    %s15 = sadd.s32 1, %s11
  $region7: #{bn_relu_conv.3} parent=0 // loop_footer_branch
    %10 = sbr.rel target = $region3
  $region8: #{bn_relu_conv.3} parent=0 // loop_exit
    _

</llo_original>
